<compile_context>
chip_gen: v7x
topology: tpu7x:2x2x1
jax: 0.10.0
libtpu: 0.0.40
codegen_flags: <defaults>
</compile_context>

<pallas_src>
import functools
import math

import jax
import jax.numpy as jnp
from jax import lax
from jax.experimental import pallas as pl
from jax.experimental.pallas import tpu as pltpu


def _vmem_limit():
    """Generation-aware scoped-VMEM budget (v7x: 64 MiB physical, v5e/v6e: 128)."""
    try:
        cap = getattr(pltpu.get_tpu_info(), "vmem_capacity_bytes", None)
        if cap:
            return int(min(cap * 3 // 4, 100 * 1024 * 1024))
    except Exception:
        pass
    return 48 * 1024 * 1024


def _pick_tile(total, cap):
    """Largest tile <= cap that divides `total` (multiple of 8 when tiled)."""
    if total <= cap:
        return total
    t = (cap // 8) * 8
    while t >= 8:
        if total % t == 0:
            return t
        t -= 8
    # TODO(synk): ragged tails would need in-kernel masking; fall back to full dim.
    return total


def _keep_parallel(tile, total, batch):
    """Keep megacore parallel extent >= 2 when possible (v7x has 2 TCs/chip)."""
    while batch * (total // tile) < 2 and tile % 16 == 0 and total % (tile // 2) == 0:
        tile //= 2
    return tile


# --------------------- fused multi-role projection --------------------------
# x: (B, S, K) @ w_stack: (R, K, inner)  ->  (B, R, S, inner)
# One grid step reads the x tile once and produces ALL roles/heads (lane-dense
# N = inner matmuls and lane-dense stores).  Full-K block: no accumulator.
# TODO(synk): add a K-tiled accumulator variant if K (query/context dim) ever
# exceeds a few thousand; for this module K <= ~1-2K so a full-K block is best.

def _proj_kernel(x_ref, w_ref, o_ref, *, n_roles):
    x = x_ref[0]                                           # (tm, K)
    for r in range(n_roles):
        o_ref[0, r] = jnp.dot(x, w_ref[r],
                              preferred_element_type=jnp.float32
                              ).astype(o_ref.dtype)


def pallas_proj_to_roles(x, w_stack, *, tile_rows=512):
    B, S, K = x.shape
    R, K2, inner = w_stack.shape
    assert K == K2
    tm = _keep_parallel(_pick_tile(S, tile_rows), S, B)
    grid = (B, S // tm)

    itemsize = jnp.dtype(x.dtype).itemsize
    cost = pl.CostEstimate(
        flops=int(2 * B * S * K * R * inner),
        transcendentals=0,
        bytes_accessed=int((B * S * K + R * K * inner + B * R * S * inner)
                           * itemsize))

    return pl.pallas_call(
        functools.partial(_proj_kernel, n_roles=R),
        out_shape=jax.ShapeDtypeStruct((B, R, S, inner), x.dtype),
        grid=grid,
        in_specs=[
            pl.BlockSpec((1, tm, K), lambda b, i: (b, i, 0)),
            pl.BlockSpec((R, K, inner), lambda b, i: (0, 0, 0)),   # resident
        ],
        out_specs=pl.BlockSpec((1, R, tm, inner), lambda b, i: (b, 0, i, 0)),
        compiler_params=pltpu.CompilerParams(
            dimension_semantics=("parallel", "parallel"),
            vmem_limit_bytes=_vmem_limit()),
        cost_estimate=cost,
    )(x, w_stack)


# ------------- flash attention (all heads in-kernel) + fused out-proj -------

def _flash_attn_outproj_kernel(q_ref, k_ref, v_ref, wo_ref, b_ref, o_ref,
                               m_ref, l_ref, acc_ref, *, heads, dim_head):
    kv = pl.program_id(2)
    n_kv = pl.num_programs(2)
    h, d = heads, dim_head

    @pl.when(kv == 0)
    def _():
        m_ref[...] = jnp.full_like(m_ref, -jnp.inf)
        l_ref[...] = jnp.zeros_like(l_ref)
        acc_ref[...] = jnp.zeros_like(acc_ref)

    # Online softmax for every head of this q tile (static unroll over heads).
    for hh in range(h):
        cols = pl.ds(hh * d, d)
        hcol = pl.ds(hh, 1)
        q_h = q_ref[0, 0, :, cols]                 # (tq, d)
        k_h = k_ref[0, 0, :, cols]                 # (tkv, d)
        v_h = v_ref[0, 0, :, cols]                 # (tkv, d)

        # 1/sqrt(d) is pre-folded into the Q projection weights.
        s = lax.dot_general(q_h, k_h, (((1,), (1,)), ((), ())),
                            preferred_element_type=jnp.float32)   # (tq, tkv)

        m_prev = m_ref[:, hcol]                    # (tq, 1)
        m_new = jnp.maximum(m_prev, jnp.max(s, axis=-1, keepdims=True))
        alpha = jnp.exp(m_prev - m_new)
        # TODO(synk): on v6e/v7x a bf16 exp here roughly doubles EUP throughput
        # (do not apply on v5e); kept in f32 for reference-level accuracy.
        p = jnp.exp(s - m_new)
        l_ref[:, hcol] = alpha * l_ref[:, hcol] + jnp.sum(p, axis=-1,
                                                          keepdims=True)
        acc_ref[:, cols] = alpha * acc_ref[:, cols] + jnp.dot(
            p.astype(v_h.dtype), v_h, preferred_element_type=jnp.float32)
        m_ref[:, hcol] = m_new

    @pl.when(kv == n_kv - 1)
    def _():
        # Normalize each head's slice, then ONE full-depth output projection:
        # (tq, inner) @ (inner, out_dim) with Wo / bias fully resident.
        for hh in range(h):
            cols = pl.ds(hh * d, d)
            inv = pl.reciprocal(l_ref[:, pl.ds(hh, 1)], approx=False)
            acc_ref[:, cols] = acc_ref[:, cols] * inv
        out = jnp.dot(acc_ref[...].astype(wo_ref.dtype), wo_ref[...],
                      preferred_element_type=jnp.float32)
        o_ref[0] = (out + b_ref[...].astype(jnp.float32)).astype(o_ref.dtype)


def pallas_attention_outproj(q_arr, kv_arr, rq, rk, rv, wo_t, bo, *, heads,
                             dim_head, out_dim, tile_q=512, tile_kv=1024,
                             out_dtype=jnp.float32):
    """q_arr: (B, Rq, N, inner) with Q at role rq; kv_arr: (B, Rkv, M, inner)
       with K at role rk and V at role rv.  wo_t: (inner, out_dim), bo: (out_dim,).
       Returns (B, N, out_dim) = attention + output projection + bias."""
    B, _, N, inner = q_arr.shape
    _, _, M, _ = kv_arr.shape
    assert inner == heads * dim_head
    tq = _keep_parallel(_pick_tile(N, tile_q), N, B)
    tkv = _pick_tile(M, tile_kv)
    grid = (B, N // tq, M // tkv)
    bo2d = bo.reshape(1, out_dim).astype(jnp.float32)

    itemsize = jnp.dtype(q_arr.dtype).itemsize
    cost = pl.CostEstimate(
        flops=int(4 * B * heads * N * M * dim_head
                  + 2 * B * N * inner * out_dim),
        transcendentals=int(B * heads * N * M),
        bytes_accessed=int((B * N * inner + 2 * B * (N // tq) * M * inner
                            + inner * out_dim) * itemsize
                           + B * N * out_dim * 4))

    kernel = functools.partial(_flash_attn_outproj_kernel,
                               heads=heads, dim_head=dim_head)
    # TODO(synk): if the K/V DMA becomes exposed at very large M, add
    # pipeline_mode=pl.Buffered(3) on the K/V BlockSpecs.
    return pl.pallas_call(
        kernel,
        out_shape=jax.ShapeDtypeStruct((B, N, out_dim), out_dtype),
        grid=grid,
        in_specs=[
            pl.BlockSpec((1, 1, tq, inner), lambda b, i, kv: (b, rq, i, 0)),
            pl.BlockSpec((1, 1, tkv, inner), lambda b, i, kv: (b, rk, kv, 0)),
            pl.BlockSpec((1, 1, tkv, inner), lambda b, i, kv: (b, rv, kv, 0)),
            pl.BlockSpec((inner, out_dim), lambda b, i, kv: (0, 0)),  # resident
            pl.BlockSpec((1, out_dim), lambda b, i, kv: (0, 0)),      # resident
        ],
        out_specs=pl.BlockSpec((1, tq, out_dim), lambda b, i, kv: (b, i, 0)),
        scratch_shapes=[
            pltpu.VMEM((tq, heads), jnp.float32),    # m (running max, per head)
            pltpu.VMEM((tq, heads), jnp.float32),    # l (running denom, per head)
            pltpu.VMEM((tq, inner), jnp.float32),    # lane-dense PV accumulator
        ],
        compiler_params=pltpu.CompilerParams(
            dimension_semantics=("parallel", "parallel", "arbitrary"),
            vmem_limit_bytes=_vmem_limit()),
        cost_estimate=cost,
    )(q_arr, kv_arr, kv_arr, wo_t, bo2d)


# ----------------------------- module wrapper --------------------------------

def init_cross_attention_params(key, query_dim, context_dim=None, heads=8,
                                dim_head=64):
    """Mirrors torch.nn.Linear default init; weights in torch (out, in) layout."""
    if context_dim is None:
        context_dim = query_dim
    inner_dim = heads * dim_head
    k1, k2, k3, k4, k5 = jax.random.split(key, 5)

    def lin_w(k, out_f, in_f):
        bound = 1.0 / math.sqrt(in_f)
        return jax.random.uniform(k, (out_f, in_f), jnp.float32, -bound, bound)

    wq = lin_w(k1, inner_dim, query_dim)
    wk = lin_w(k2, inner_dim, context_dim)
    wv = lin_w(k3, inner_dim, context_dim)
    wo = lin_w(k4, query_dim, inner_dim)
    bo = jax.random.uniform(k5, (query_dim,), jnp.float32,
                            -1.0 / math.sqrt(inner_dim), 1.0 / math.sqrt(inner_dim))
    return dict(wq=wq, wk=wk, wv=wv, wo=wo, bo=bo, heads=heads, dim_head=dim_head)


def cross_attention_forward(params, x, context=None, *,
                            compute_dtype=jnp.float32):
    """x: (B, N, query_dim); context: (B, M, context_dim) or None (self-attn)."""
    h = params["heads"]
    d = params["dim_head"]
    scale = float(d) ** -0.5
    B, N, Dq = x.shape
    cd = compute_dtype

    wq, wk, wv, wo, bo = (params["wq"], params["wk"], params["wv"],
                          params["wo"], params["bo"])

    # Tiny weight-only re-layouts (precompute at init in a real model).
    # torch Linear computes x @ W.T, so we use (in, out) = W.T; the 1/sqrt(d)
    # attention scale is folded into the Q weights (weight-side, done once).
    wq_t = (wq.T * scale).astype(cd)     # (Dq, inner)
    wk_t = wk.T.astype(cd)               # (Dc, inner)
    wv_t = wv.T.astype(cd)
    wo_t = wo.T.astype(cd)               # (inner, Dq)

    if context is None:
        # Self-attention: one fused Q/K/V projection -> x read from HBM once.
        qkv = pallas_proj_to_roles(x.astype(cd),
                                   jnp.stack([wq_t, wk_t, wv_t], axis=0))
        q_arr, kv_arr = qkv, qkv            # (B, 3, N, inner)
        rq, rk, rv = 0, 1, 2
    else:
        # Cross-attention: Q from x; fused K/V projection over the context.
        q_arr = pallas_proj_to_roles(x.astype(cd), wq_t[None])          # (B,1,N,inner)
        kv_arr = pallas_proj_to_roles(context.astype(cd),
                                      jnp.stack([wk_t, wv_t], axis=0))  # (B,2,M,inner)
        rq, rk, rv = 0, 0, 1

    # Flash attention + fused output projection (+ bias).
    # Dropout(p=0.0) = identity; the torch `mask` arg is unused by the module.
    return pallas_attention_outproj(q_arr, kv_arr, rq, rk, rv, wo_t, bo,
                                    heads=h, dim_head=d, out_dim=Dq,
                                    out_dtype=jnp.float32)


def _reference_forward(params, x, context=None):
    """Pure-JAX f32 reference."""
    if context is None:
        context = x
    h, d = params["heads"], params["dim_head"]
    scale = d ** (-0.5)
    B, N, _ = x.shape
    _, M, _ = context.shape
    inner = h * d
    q = x @ params["wq"].T
    k = context @ params["wk"].T
    v = context @ params["wv"].T

    def rearr(t, n):
        return t.reshape(B, n, h, d).transpose(0, 2, 1, 3).reshape(B * h, n, d)

    q, k, v = rearr(q, N), rearr(k, M), rearr(v, M)
    sim = jnp.einsum("bid,bjd->bij", q, k) * scale
    sim = jax.nn.softmax(sim, axis=-1)
    out = jnp.einsum("bij,bjd->bid", sim, v)
    out = out.reshape(B, h, N, d).transpose(0, 2, 1, 3).reshape(B, N, inner)
    return out @ params["wo"].T + params["bo"]


if __name__ == "__main__":
    key = jax.random.PRNGKey(0)
    kx, kc, kp = jax.random.split(key, 3)

    B, N, M = 2, 8, 8
    query_dim, context_dim = 32, 32
    heads, dim_head = 4, 8

    x = jax.random.normal(kx, (B, N, query_dim), dtype=jnp.float32)
    context = jax.random.normal(kc, (B, M, context_dim), dtype=jnp.float32)

    params = init_cross_attention_params(
        kp, query_dim, context_dim=context_dim, heads=heads, dim_head=dim_head)

    # Cross-attention path (f32 compute).
    out = jax.block_until_ready(cross_attention_forward(params, x, context))
    ref = _reference_forward(params, x, context)
    assert out.shape == (B, N, query_dim)
    assert jnp.allclose(out, ref, atol=2e-2, rtol=2e-2), "cross-attn mismatch"

    # Self-attention path (fused QKV projection), f32 compute.
    out_self = jax.block_until_ready(cross_attention_forward(params, x, None))
    ref_self = _reference_forward(params, x, None)
    assert jnp.allclose(out_self, ref_self, atol=2e-2, rtol=2e-2), "self-attn mismatch"

    # bf16 MXU inputs with f32 accumulation (v6e/v7x path).
    out_bf16 = jax.block_until_ready(
        cross_attention_forward(params, x, context, compute_dtype=jnp.bfloat16))
    assert out_bf16.shape == (B, N, query_dim)
    assert jnp.allclose(out_bf16, ref, atol=7e-2, rtol=7e-2), "bf16 mismatch"

    print("KERNEL_OK")
</pallas_src>

<mosaic_0001>
module attributes {stable_mosaic.version = 11 : i64} {
  func.func @_proj_kernel(%arg0: i32, %arg1: i32, %arg2: memref<1x8x32xf32, #tpu.memory_space<vmem>>, %arg3: memref<1x32x32xf32, #tpu.memory_space<vmem>>, %arg4: memref<1x1x8x32xf32, #tpu.memory_space<vmem>>) attributes {dimension_semantics = [#tpu.dimension_semantics<parallel>, #tpu.dimension_semantics<parallel>], iteration_bounds = array<i64: 2, 1>, scalar_prefetch = 0 : i64, scratch_operands = 0 : i64, tpu.core_type = #tpu.core_type<tc>, window_params = [{transform_indices = @transform_0, window_bounds = array<i64: 1, 8, 32>}, {pipeline_mode = #tpu.pipeline_mode<synchronous>, transform_indices = @transform_1, window_bounds = array<i64: 1, 32, 32>}, {transform_indices = @transform_2, window_bounds = array<i64: 1, 1, 8, 32>}]} {
    %c0 = arith.constant 0 : index
    %c0_0 = arith.constant 0 : index
    %c0_1 = arith.constant 0 : index
    %0 = vector.load %arg2[%c0, %c0_0, %c0_1] : memref<1x8x32xf32, #tpu.memory_space<vmem>>, vector<1x8x32xf32>
    %1 = vector.shape_cast %0 : vector<1x8x32xf32> to vector<8x32xf32>
    %c0_2 = arith.constant 0 : index
    %c0_3 = arith.constant 0 : index
    %c0_4 = arith.constant 0 : index
    %2 = vector.load %arg3[%c0_2, %c0_3, %c0_4] : memref<1x32x32xf32, #tpu.memory_space<vmem>>, vector<1x32x32xf32>
    %3 = vector.shape_cast %2 : vector<1x32x32xf32> to vector<32x32xf32>
    %cst = arith.constant dense<0.000000e+00> : vector<8x32xf32>
    %4 = tpu.matmul %1, %3, %cst {dimension_numbers = #tpu.dot_dimension_numbers<[1], [0], [0], [1], [0, 0, 1, 1], [], []>} : vector<8x32xf32>, vector<32x32xf32>, vector<8x32xf32> -> vector<8x32xf32>
    %c0_5 = arith.constant 0 : index
    %c0_6 = arith.constant 0 : index
    %c0_7 = arith.constant 0 : index
    %c0_8 = arith.constant 0 : index
    %5 = vector.load %arg4[%c0_5, %c0_6, %c0_7, %c0_8] : memref<1x1x8x32xf32, #tpu.memory_space<vmem>>, vector<1x1x8x32xf32>
    %6 = vector.shape_cast %5 : vector<1x1x8x32xf32> to vector<8x32xf32>
    %7 = vector.shape_cast %4 : vector<8x32xf32> to vector<1x1x8x32xf32>
    tpu.vector_store %arg4[%c0_5, %c0_6, %c0_7, %c0_8], %7 {strides = array<i32>} : memref<1x1x8x32xf32, #tpu.memory_space<vmem>>, vector<1x1x8x32xf32>,
    return
  }
  func.func @transform_0(%arg0: i32, %arg1: i32) -> (i32, i32, i32) {
    %c0_i32 = arith.constant 0 : i32
    %c0_i32_0 = arith.constant 0 : i32
    return %arg0, %arg1, %c0_i32 : i32, i32, i32
  }
  func.func @transform_1(%arg0: i32, %arg1: i32) -> (i32, i32, i32) {
    %c0_i32 = arith.constant 0 : i32
    %c0_i32_0 = arith.constant 0 : i32
    %c0_i32_1 = arith.constant 0 : i32
    %c0_i32_2 = arith.constant 0 : i32
    return %c0_i32, %c0_i32_0, %c0_i32_1 : i32, i32, i32
  }
  func.func @transform_2(%arg0: i32, %arg1: i32) -> (i32, i32, i32, i32) {
    %c0_i32 = arith.constant 0 : i32
    %c0_i32_0 = arith.constant 0 : i32
    %c0_i32_1 = arith.constant 0 : i32
    return %arg0, %c0_i32, %arg1, %c0_i32_0 : i32, i32, i32, i32
  }
}

</mosaic_0001>

<llo_original>
// kernel: tpu_custom_call.1
$region0: #{tpu_custom_call.1}
  #allocation0 [shape = 'u32[]', space=smem, size = 0x4, offset = 0x4, fixed_abs, tag = 'smem constant byte address 0x4 - core index']
  #allocation1 [shape = 'u32[144,128]{1,0:T(1,128)}', space=vmem, size = 0x12000, scoped, tag = 'internal scratch']
  %s0 = inlined_call_operand.hbm [shape: f32[2,8,32], index: 0, kind: input, shape index: {}]
  %s1 = inlined_call_operand.hbm [shape: f32[1,32,32], index: 1, kind: input, shape index: {}]
  %s2 = inlined_call_operand.hbm [shape: f32[2,1,8,32], index: 2, kind: output, shape index: {}]
  %s3 = sld [smem:[#allocation0]]
  $region49: #{tpu_custom_call.1} parent=0
    _
  %s5 = ssub.s32 1, %s3
  %s6 = scalar_select 0, %s5, %s3
  $region1: #{tpu_custom_call.1} parent=0
    #allocation2 [shape = 'u8[8192]{0}', space=vmem, size = 0x2000, scoped, tag = 'input window, operand 0']
    #allocation3 [shape = 's32[2]{0}', space=sflag, size = 0x8, scoped, tag = 'scoped memory for tpu_custom_call.1']
    #allocation4 [shape = 's32[2]{0}', space=sflag, size = 0x8, scoped, tag = 'scoped memory for tpu_custom_call.1']
    #allocation5 [shape = 'u8[16384]{0}', space=vmem, size = 0x4000, scoped, tag = 'input window, operand 1, single buffered']
    #allocation6 [shape = 's32[1]{0}', space=sflag, size = 0x4, scoped, tag = 'scoped memory for tpu_custom_call.1']
    #allocation7 [shape = 'u8[8192]{0}', space=vmem, size = 0x2000, scoped, tag = 'output window, operand 0']
    %7 = vsyncpa [#allocation3], 0
    %s8 = scalar_lea.sflag [#allocation3], 1
    %9 = vsyncpa %s8, 0
    %10 = vsyncpa [#allocation6], 0
    %11 = vsyncpa [#allocation4], 0
    %s12 = scalar_lea.sflag [#allocation4], 1
    %13 = vsyncpa %s12, 0
    loop: start=0, step=1, limit=4
    $region2: #{tpu_custom_call.1} parent=1 // loop_pre_header
      _
    $region3: #{tpu_custom_call.1} parent=1 // loop_header
      %s15 = sphi 0, %s19
      %p16 = scmp.ge.s32.totalorder %s15, 4
      %s22 = sphi 0, %s34
      %s23 = sphi 0, %s30
      %s24 = sphi 0, %s22
      %s25 = sphi 0, %s23
      %s26 = sphi 0, %s24
      %s27 = sphi 0, %s25
      %s39 = sphi 0, %s41
      %s42 = sphi 0, %s39
      %s43 = sphi 0, %s42
      %s59 = sphi 0, %s43
      %s63 = sphi 0, %s63
      %s65 = sphi 0, %s63
      %s66 = sphi 0, %s65
      %s80 = sphi 0, %s66
      %s88 = sphi 0, %s90
      %s91 = sphi 0, %s88
      %s92 = sphi 0, %s91
      %s108 = sphi 0, %s92
    $region4: #{tpu_custom_call.1} parent=1 // loop_header_branch
      %18 = sbr.rel (%p16) target = $region8
    $region5: #{tpu_custom_call.1} parent=1 // loop_body
      %s20 = ssub.s32 %s15, 1
      %s21 = ssub.s32 %s15, 2
      %s28 = sadd.s32 1, %s23
      %p29 = scmp.ge.s32.totalorder %s28, 1
      %s30 = scalar_select %p29, 0, %s28
      %s31 = sadd.s32 1, %s22
      %s32 = scalar_select %p29, %s31, %s22
      %p33 = scmp.ge.s32.totalorder %s32, 2
      %s34 = scalar_select %p33, 0, %s32
      %s35 = ssub.s32 %s22, %s34
      %s36 = ssub.s32 %s23, %s30
      %s37 = sor.u32 %s35, %s36
      %p38 = scmp.eq.s32.totalorder %s37, 0
      %s40 = sadd.s32 %s39, 1
      %s41 = scalar_select %p38, %s39, %s40
      %p44 = pneg %p38
      %p45 = scmp.eq.s32.totalorder %s15, 1
      %p46 = por %p44, %p45
      %p47 = scmp.ne.s32.totalorder %s39, %s42
      %p48 = scmp.eq.s32.totalorder %s15, 0
      %p49 = por %p47, %p48
      %p50 = scmp.ne.s32.totalorder %s39, %s42
      %p51 = scmp.eq.s32.totalorder %s20, 1
      %p52 = por %p50, %p51
      %p53 = scmp.ne.s32.totalorder %s42, %s43
      %p54 = scmp.eq.s32.totalorder %s20, 0
      %p55 = por %p53, %p54
      %p56 = scmp.ne.s32.totalorder %s42, %s43
      %p57 = scmp.eq.s32.totalorder %s21, 1
      %p58 = por %p56, %p57
      %p60 = scmp.ne.s32.totalorder %s43, %s59
      %p61 = scmp.eq.s32.totalorder %s21, 0
      %p62 = por %p60, %p61
      %s64 = sadd.s32 %s63, 1
      %p67 = scmp.eq.s32.totalorder %s15, 1
      %p68 = scmp.ne.s32.totalorder %s63, %s65
      %p69 = scmp.eq.s32.totalorder %s15, 0
      %p70 = por %p68, %p69
      %p71 = scmp.ne.s32.totalorder %s63, %s65
      %p72 = scmp.eq.s32.totalorder %s20, 1
      %p73 = por %p71, %p72
      %p74 = scmp.ne.s32.totalorder %s65, %s66
      %p75 = scmp.eq.s32.totalorder %s20, 0
      %p76 = por %p74, %p75
      %p77 = scmp.ne.s32.totalorder %s65, %s66
      %p78 = scmp.eq.s32.totalorder %s21, 1
      %p79 = por %p77, %p78
      %p81 = scmp.ne.s32.totalorder %s66, %s80
      %p82 = scmp.eq.s32.totalorder %s21, 0
      %p83 = por %p81, %p82
      %s84 = ssub.s32 %s22, %s34
      %s85 = ssub.s32 %s23, %s30
      %s86 = sor.u32 %s84, %s85
      %p87 = scmp.eq.s32.totalorder %s86, 0
      %s89 = sadd.s32 %s88, 1
      %s90 = scalar_select %p87, %s88, %s89
      %p93 = pneg %p87
      %p94 = scmp.eq.s32.totalorder %s15, 1
      %p95 = por %p93, %p94
      %p96 = scmp.ne.s32.totalorder %s88, %s91
      %p97 = scmp.eq.s32.totalorder %s15, 0
      %p98 = por %p96, %p97
      %p99 = scmp.ne.s32.totalorder %s88, %s91
      %p100 = scmp.eq.s32.totalorder %s20, 1
      %p101 = por %p99, %p100
      %p102 = scmp.ne.s32.totalorder %s91, %s92
      %p103 = scmp.eq.s32.totalorder %s20, 0
      %p104 = por %p102, %p103
      %p105 = scmp.ne.s32.totalorder %s91, %s92
      %p106 = scmp.eq.s32.totalorder %s21, 1
      %p107 = por %p105, %p106
      %p109 = scmp.ne.s32.totalorder %s92, %s108
      %p110 = scmp.eq.s32.totalorder %s21, 0
      %p111 = por %p109, %p110
      %p112 = scmp.le.s32.totalorder 1, %s15
      %p113 = scmp.lt.s32.totalorder %s15, 3
      %p114 = pnand %p112, %p113
      %p115 = pneg %p114
      // Predicated region
      $region9: #{tpu_custom_call.1} parent=5 // pred_check
        _
      $region10: #{tpu_custom_call.1} parent=5 // pred_check_branch
        %117 = sbr.rel (%p114) target = $region12
      $region11: #{tpu_custom_call.1} parent=5 // pred_region
        %s118 = ssub.s32 %s15, 1
        // Predicated region
        $region13: #{tpu_custom_call.1} parent=11 // pred_check
          %p119 = pneg %p76
        $region14: #{tpu_custom_call.1} parent=11 // pred_check_branch
          %121 = sbr.rel (%p119) target = $region16
        $region15: #{tpu_custom_call.1} parent=11 // pred_region
          %s123 = ssub.s32 512, 512
          %124 = vsyncadd [#allocation6], %s123
          %s125 = sshll.u32 [#allocation5], 4
          %s126 = int_to_ptr.vmem [resolvable:$true] %s125
          %131 = dma.hbm_to_vmem [thread:$0]  %s1, 512, %s126, [#allocation6], 128, 128, 8
        $region16: #{tpu_custom_call.1} parent=11 // pred_fallthru
          _
      $region12: #{tpu_custom_call.1} parent=5 // pred_fallthru
        _
      %p132 = scmp.lt.s32.totalorder %s15, 2
      // Predicated region
      $region17: #{tpu_custom_call.1} parent=5 // pred_check
        %p133 = pneg %p132
      $region18: #{tpu_custom_call.1} parent=5 // pred_check_branch
        %135 = sbr.rel (%p133) target = $region20
      $region19: #{tpu_custom_call.1} parent=5 // pred_region
        // Predicated region
        $region21: #{tpu_custom_call.1} parent=19 // pred_check
          %p136 = pneg %p49
        $region22: #{tpu_custom_call.1} parent=19 // pred_check_branch
          %138 = sbr.rel (%p136) target = $region24
        $region23: #{tpu_custom_call.1} parent=19 // pred_region
          %s139 = sand.u32 %s39, 1
          %s140 = scalar_lea.sflag [#allocation3], %s139
          %s141 = sand.u32 %s39, 1
          %s142 = smul.addr %s141, 8
          %s143 = scalar_lea.vmem [#allocation2], %s142
          %s145 = ssub.s32 128, 128
          %146 = vsyncadd %s140, %s145
          %s147 = sadd.s32 %s23, %s22
          %s148 = smul.addr %s147, 128
          %s149 = scalar_lea.hbm %s0, %s148
          %s151 = sshll.u32 %s143, 4
          %s152 = int_to_ptr.vmem [resolvable:$true] %s151
          %154 = dma.hbm_to_vmem [thread:$0]  %s149, 128, %s152, %s140
        $region24: #{tpu_custom_call.1} parent=19 // pred_fallthru
          _
      $region20: #{tpu_custom_call.1} parent=5 // pred_fallthru
        _
      %p155 = scmp.le.s32.totalorder 1, %s15
      %p156 = scmp.lt.s32.totalorder %s15, 3
      %p157 = pnand %p155, %p156
      %p158 = pneg %p157
      // Predicated region
      $region25: #{tpu_custom_call.1} parent=5 // pred_check
        _
      $region26: #{tpu_custom_call.1} parent=5 // pred_check_branch
        %160 = sbr.rel (%p157) target = $region28
      $region27: #{tpu_custom_call.1} parent=5 // pred_region
        %s161 = ssub.s32 %s15, 1
        %s162 = sand.u32 %s42, 1
        %s163 = scalar_lea.sflag [#allocation3], %s162
        %s164 = sand.u32 %s42, 1
        %s165 = smul.addr %s164, 8
        %s166 = scalar_lea.vmem [#allocation2], %s165
        // Predicated region
        $region29: #{tpu_custom_call.1} parent=27 // pred_check
          %p167 = pneg %p55
        $region30: #{tpu_custom_call.1} parent=27 // pred_check_branch
          %169 = sbr.rel (%p167) target = $region32
        $region31: #{tpu_custom_call.1} parent=27 // pred_region
          %170 = dma.done %s163, 128
        $region32: #{tpu_custom_call.1} parent=27 // pred_fallthru
          _
        // Predicated region
        $region33: #{tpu_custom_call.1} parent=27 // pred_check
          %p171 = pneg %p76
        $region34: #{tpu_custom_call.1} parent=27 // pred_check_branch
          %173 = sbr.rel (%p171) target = $region36
        $region35: #{tpu_custom_call.1} parent=27 // pred_region
          %174 = dma.done [#allocation6], 512
        $region36: #{tpu_custom_call.1} parent=27 // pred_fallthru
          _
        %s175 = sand.u32 %s42, 1
        %s176 = scalar_lea.sflag [#allocation3], %s175
        %s177 = sand.u32 %s42, 1
        %s178 = smul.addr %s177, 8
        %s179 = scalar_lea.vmem [#allocation2], %s178
        %p180 = pneg %p55
        %p181 = pneg %p52
        %p182 = pneg %p76
        %p183 = pneg %p73
        %p184 = pneg %p104
        %p185 = pneg %p101
        %s186 = sand.u32 %s91, 1
        %s187 = scalar_lea.sflag [#allocation4], %s186
        %s188 = sand.u32 %s91, 1
        %s189 = smul.addr %s188, 8
        %s190 = scalar_lea.vmem [#allocation7], %s189
        %v191 = vld [vmem:[%s166] sm:$0xff]
        %v192 = vld [vmem:[#allocation5] sm:$0xff]
        %v193 = vld [vmem:[#allocation5 + $0x8] sm:$0xff]
        %v194 = vld [vmem:[#allocation5 + $0x10] sm:$0xff]
        %v195 = vld [vmem:[#allocation5 + $0x18] sm:$0xff]
        %vm196 = vcmask 261120
        %v198 = vsel %vm196, %v191, 0
        %200 = vmatprep.subr.mxu0 0.0
        %201 = vmatpush1.msra.mxu0 %v192
        %202 = vmatprep.subr.mxu0 0.0
        %203 = vmatpush1.msra.mxu0 %v193
        %204 = vmatprep.subr.mxu0 0.0
        %205 = vmatpush1.msra.mxu0 %v194
        %206 = vmatprep.subr.mxu0 0.0
        %207 = vmatpush1.msra.mxu0 %v195
        %208 = vmatprep.subr.mxu0 0.0
        %209 = vmatpush1.msra.mxu0 0.0
        %210 = vmatprep.subr.mxu0 0.0
        %211 = vmatpush1.msra.mxu0 0.0
        %212 = vmatprep.subr.mxu0 0.0
        %213 = vmatpush1.msra.mxu0 0.0
        %214 = vmatprep.subr.mxu0 0.0
        %215 = vmatpush1.msra.mxu0 0.0
        %216 = vmatprep.subr.mxu0 0.0
        %217 = vmatpush1.msra.mxu0 0.0
        %218 = vmatprep.subr.mxu0 0.0
        %219 = vmatpush1.msra.mxu0 0.0
        %220 = vmatprep.subr.mxu0 0.0
        %221 = vmatpush1.msra.mxu0 0.0
        %222 = vmatprep.subr.mxu0 0.0
        %223 = vmatpush1.msra.mxu0 0.0
        %224 = vmatprep.subr.mxu0 0.0
        %225 = vmatpush1.msra.mxu0 0.0
        %226 = vmatprep.subr.mxu0 0.0
        %227 = vmatpush1.msra.mxu0 0.0
        %228 = vmatprep.subr.mxu0 0.0
        %229 = vmatpush1.msra.mxu0 0.0
        %230 = vmatprep.subr.mxu0 0.0
        %231 = vmatpush1.msra.mxu0 0.0
        %232 = vmatprep.subr.mxu0 0.0
        %233 = vmatpush1.msra.mxu0 0.0
        %234 = vmatprep.subr.mxu0 0.0
        %235 = vmatpush1.msra.mxu0 0.0
        %236 = vmatprep.subr.mxu0 0.0
        %237 = vmatpush1.msra.mxu0 0.0
        %238 = vmatprep.subr.mxu0 0.0
        %239 = vmatpush1.msra.mxu0 0.0
        %240 = vmatprep.subr.mxu0 0.0
        %241 = vmatpush1.msra.mxu0 0.0
        %242 = vmatprep.subr.mxu0 0.0
        %243 = vmatpush1.msra.mxu0 0.0
        %244 = vmatprep.subr.mxu0 0.0
        %245 = vmatpush1.msra.mxu0 0.0
        %246 = vmatprep.subr.mxu0 0.0
        %247 = vmatpush1.msra.mxu0 0.0
        %248 = vmatprep.subr.mxu0 0.0
        %249 = vmatpush1.msra.mxu0 0.0
        %250 = vmatprep.subr.mxu0 0.0
        %251 = vmatpush1.msra.mxu0 0.0
        %252 = vmatprep.subr.mxu0 0.0
        %253 = vmatpush1.msra.mxu0 0.0
        %254 = vmatprep.subr.mxu0 0.0
        %255 = vmatpush1.msra.mxu0 0.0
        %256 = vmatprep.subr.mxu0 0.0
        %257 = vmatpush1.msra.mxu0 0.0
        %258 = vmatprep.subr.mxu0 0.0
        %259 = vmatpush1.msra.mxu0 0.0
        %260 = vmatprep.subr.mxu0 0.0
        %261 = vmatpush1.msra.mxu0 0.0
        %262 = vmatprep.subr.mxu0 0.0
        %263 = vmatpush1.msra.mxu0 0.0
        %264 = vmatprep.mubr.f32.mxu0 0.0
        %265 = vmatmul.mubr.f32.gmra.mrb[0].mxu0 %v198
        %v266 = vpop.f32.mrb[0].mxu0
        %v267 = vadd.f32 0.0, %v266
        %v268 = vpop.f32.mrb[0].mxu0
        %269 = vdwg.mxu0
        %270 = vst.msk [vmem:[%s190] sm:$0xff] %vm196, %v267
        %s271 = sand.u32 %s91, 1
        %s272 = scalar_lea.sflag [#allocation4], %s271
        %s273 = sand.u32 %s91, 1
        %s274 = smul.addr %s273, 8
        %s275 = scalar_lea.vmem [#allocation7], %s274
        // Predicated region
        $region37: #{tpu_custom_call.1} parent=27 // pred_check
          %p276 = pneg %p101
        $region38: #{tpu_custom_call.1} parent=27 // pred_check_branch
          %278 = sbr.rel (%p276) target = $region40
        $region39: #{tpu_custom_call.1} parent=27 // pred_region
          %s280 = ssub.s32 128, 128
          %281 = vsyncadd %s272, %s280
          %s282 = sadd.s32 %s25, %s24
          %s283 = smul.addr %s282, 128
          %s284 = scalar_lea.hbm %s2, %s283
          %s286 = sshll.u32 %s275, 4
          %s287 = int_to_ptr.vmem [resolvable:$true] %s286
          %289 = dma.vmem_to_hbm [thread:$0]  %s287, 128, %s284, %s272
        $region40: #{tpu_custom_call.1} parent=27 // pred_fallthru
          _
      $region28: #{tpu_custom_call.1} parent=5 // pred_fallthru
        _
      %p290 = scmp.le.s32.totalorder 2, %s15
      // Predicated region
      $region41: #{tpu_custom_call.1} parent=5 // pred_check
        %p291 = pneg %p290
      $region42: #{tpu_custom_call.1} parent=5 // pred_check_branch
        %293 = sbr.rel (%p291) target = $region44
      $region43: #{tpu_custom_call.1} parent=5 // pred_region
        %s294 = ssub.s32 %s15, 2
        // Predicated region
        $region45: #{tpu_custom_call.1} parent=43 // pred_check
          %p295 = pneg %p107
        $region46: #{tpu_custom_call.1} parent=43 // pred_check_branch
          %297 = sbr.rel (%p295) target = $region48
        $region47: #{tpu_custom_call.1} parent=43 // pred_region
          %s298 = sand.u32 %s92, 1
          %s299 = scalar_lea.sflag [#allocation4], %s298
          %s300 = sand.u32 %s92, 1
          %s301 = smul.addr %s300, 8
          %s302 = scalar_lea.vmem [#allocation7], %s301
          %303 = dma.done %s299, 128
        $region48: #{tpu_custom_call.1} parent=43 // pred_fallthru
          _
      $region44: #{tpu_custom_call.1} parent=5 // pred_fallthru
        _
    $region6: #{tpu_custom_call.1} parent=1 // loop_footer
      %s19 = sadd.s32 1, %s15
    $region7: #{tpu_custom_call.1} parent=1 // loop_footer_branch
      %14 = sbr.rel target = $region3
    $region8: #{tpu_custom_call.1} parent=1 // loop_exit
      _
    %304 = vsyncpa [#allocation3], 1
    %s305 = scalar_lea.sflag [#allocation3], 1
    %306 = vsyncpa %s305, 1
    %307 = vsyncpa [#allocation6], 1
    %308 = vsyncpa [#allocation4], 1
    %s309 = scalar_lea.sflag [#allocation4], 1
    %310 = vsyncpa %s309, 1

</llo_original>
